<compile_context>
chip_gen: v7x
topology: tpu7x:2x2x1
jax: 0.10.0
libtpu: 0.0.40
codegen_flags: <defaults>
</compile_context>

<pallas_src>
import jax
import jax.numpy as jnp
import numpy as np
from jax import lax
from jax.experimental import pallas as pl
from jax.experimental.pallas import tpu as pltpu


# ----------------------------------------------------------------------------
# kernel
# ----------------------------------------------------------------------------
def _make_kernel():
    def conv_banded(lhs_bf16, w_ref):
        # out[r] = lhs[r-1] @ w[0] + lhs[r] @ w[1] + lhs[r+1] @ w[2]
        # Row shifts are sublane rotations (XLU).  The wrapped-around source
        # rows are always zero pad rows, so no masking is needed here.
        p0 = jnp.dot(lhs_bf16, w_ref[0], preferred_element_type=jnp.float32)
        p1 = jnp.dot(lhs_bf16, w_ref[1], preferred_element_type=jnp.float32)
        p2 = jnp.dot(lhs_bf16, w_ref[2], preferred_element_type=jnp.float32)
        m = p1.shape[0]
        down = pltpu.roll(p0, 1, 0)       # row r <- p0[r-1]
        up = pltpu.roll(p2, m - 1, 0)     # row r <- p2[r+1]
        return p1 + down + up

    def kernel(xp_ref, w1_ref, b1_ref, w2_ref, b2_ref, rmask_ref, o_ref):
        xp_f32 = xp_ref[0]                      # (M, Wp*Cin)  padded, batch-stacked, f32
        xp = xp_f32.astype(jnp.bfloat16)        # matmul LHS in bf16
        rmask = rmask_ref[...]                  # (M, 1)  1 on interior rows, 0 on pad rows

        # conv1 (+ folded bn1 scale) + bias + relu.  Border columns are zero by
        # construction of the banded weights / bias; vertical pad rows are
        # zeroed by the row mask so they act as padding for conv2.
        acc1 = conv_banded(xp, w1_ref)
        mid = jnp.maximum(acc1 + b1_ref[...], 0.0) * rmask

        # conv2 (+ folded bn2 scale) + bias + identity residual + relu.
        acc2 = conv_banded(mid.astype(jnp.bfloat16), w2_ref)
        out = acc2 + b2_ref[...] + xp_f32       # residual in exact f32
        o_ref[0] = jnp.maximum(out, 0.0).astype(o_ref.dtype)

    return kernel


# ----------------------------------------------------------------------------
# host-side parameter preparation
# ----------------------------------------------------------------------------
def _banded_weights(w_oihw, Wp, scale):
    """(Cout, Cin, 3, 3) OIHW + per-channel BN scale -> banded (3, Wp*Cin, Wp*Cout).

    Band dy maps a horizontally padded row (Wp*Cin lanes) to a horizontally
    padded output row (Wp*Cout lanes); the 3 dx taps are the 3 block diagonals
    and the two border output columns are identically zero.
    """
    Cout, Cin, _, _ = w_oihw.shape
    W = Wp - 2
    w_hwio = jnp.transpose(w_oihw, (2, 3, 1, 0)) * scale[None, None, None, :]  # (3,3,Cin,Cout)
    wi = np.arange(Wp)[None, :, None]
    wo = np.arange(Wp)[None, None, :]
    dx = np.arange(3)[:, None, None]
    sel = ((wi == wo - 1 + dx) & (wo >= 1) & (wo <= W)).astype(np.float32)      # (3, Wp, Wp)
    wb = jnp.einsum('xuv,yxab->yuavb', jnp.asarray(sel), w_hwio)                # (3,Wp,Cin,Wp,Cout)
    return wb.reshape(3, Wp * Cin, Wp * Cout)


def _wide_bias(bias, Wp):
    """Per-channel bias tiled over the W interior columns, zero on the borders."""
    C = bias.shape[0]
    W = Wp - 2
    col = np.zeros((Wp,), np.float32)
    col[1:W + 1] = 1.0
    b = jnp.asarray(col)[:, None] * bias[None, :].astype(jnp.float32)           # (Wp, C)
    return b.reshape(1, Wp * C)


def _pick_nb(N, Hp, Wp, Cin, Cout):
    """Number of batch items stacked into the matmul M dimension per grid step."""
    budget = 8 * 1024 * 1024    # bytes for one stacked f32 activation block
    best = 1
    for d in range(1, N + 1):
        if N % d:
            continue
        if d * Hp * Wp * max(Cin, Cout) * 4 > budget:
            break
        best = d
        if d * Hp >= 256:       # enough MXU rows on v6e/v7x
            break
    return best


# ----------------------------------------------------------------------------
# wrapper
# ----------------------------------------------------------------------------
def basic_block_pallas(x_nchw, params, eps=1e-5):
    (w1, g1, be1, rm1, rv1, w2, g2, be2, rm2, rv2) = params
    N, C, H, W = x_nchw.shape
    Cin = C
    Cout = w1.shape[0]
    assert Cin == Cout, "identity residual (downsample=None) needs inplanes == planes"
    Hp, Wp = H + 2, W + 2

    NB = _pick_nb(N, Hp, Wp, Cin, Cout)
    G = N // NB
    M_raw = NB * Hp
    M = ((M_raw + 7) // 8) * 8          # sublane-aligned stacked-row count
    KI, KO = Wp * Cin, Wp * Cout

    # channels-last, zero-padded, flattened over (W, C), NB items stacked along rows
    x_nhwc = jnp.transpose(x_nchw, (0, 2, 3, 1))
    x_pad = jnp.pad(x_nhwc, ((0, 0), (1, 1), (1, 1), (0, 0)))
    x_pad = x_pad.reshape(G, M_raw, KI).astype(jnp.float32)
    if M != M_raw:
        x_pad = jnp.pad(x_pad, ((0, 0), (0, M - M_raw), (0, 0)))

    # eval-mode BN folded: scale into conv weight columns, bias kept separate
    s1 = g1 / jnp.sqrt(rv1 + eps)
    s2 = g2 / jnp.sqrt(rv2 + eps)
    bias1 = be1 - rm1 * s1
    bias2 = be2 - rm2 * s2

    w1b = _banded_weights(w1, Wp, s1).astype(jnp.bfloat16)
    w2b = _banded_weights(w2, Wp, s2).astype(jnp.bfloat16)
    b1w = _wide_bias(bias1, Wp)
    b2w = _wide_bias(bias2, Wp)

    # row mask: 1 on interior rows of each stacked item, 0 on vertical pad rows
    # and on the sublane-alignment filler rows at the end.
    rows = np.arange(M)
    h_in = rows % Hp
    interior = (h_in >= 1) & (h_in <= H) & (rows < M_raw)
    rmask = jnp.asarray(interior.astype(np.float32)).reshape(M, 1)

    flops = int(6 * M * KO * (KI + KO)) * G
    bytes_accessed = int(x_pad.size * 4 + w1b.size * 2 + w2b.size * 2
                         + (b1w.size + b2w.size + rmask.size) * 4
                         + G * M * KO * 4)

    # VMEM budget (double-buffered blocks + in-kernel f32/bf16 temporaries)
    vmem_est = int(2 * (M * KI * 4 + M * KO * 4)
                   + 2 * 3 * (KI * KO + KO * KO) * 2
                   + 8 * M * KO * 4 + M * KI * 2
                   + (2 * KO + M) * 8)
    vmem_limit = min(64 * 1024 * 1024, max(32 * 1024 * 1024, 2 * vmem_est))

    out = pl.pallas_call(
        _make_kernel(),
        out_shape=jax.ShapeDtypeStruct((G, M, KO), x_nchw.dtype),
        grid=(G,),
        in_specs=[
            pl.BlockSpec((1, M, KI), lambda b: (b, 0, 0)),      # padded, stacked input
            pl.BlockSpec((3, KI, KO), lambda b: (0, 0, 0)),     # conv1 banded weights (bf16)
            pl.BlockSpec((1, KO), lambda b: (0, 0)),            # bn1 bias (wide)
            pl.BlockSpec((3, KO, KO), lambda b: (0, 0, 0)),     # conv2 banded weights (bf16)
            pl.BlockSpec((1, KO), lambda b: (0, 0)),            # bn2 bias (wide)
            pl.BlockSpec((M, 1), lambda b: (0, 0)),             # interior-row mask
        ],
        out_specs=pl.BlockSpec((1, M, KO), lambda b: (b, 0, 0)),
        compiler_params=pltpu.CompilerParams(
            dimension_semantics=("parallel",),
            vmem_limit_bytes=vmem_limit),
        cost_estimate=pl.CostEstimate(
            flops=flops, transcendentals=0, bytes_accessed=bytes_accessed),
    )(x_pad, w1b, b1w, w2b, b2w, rmask)

    out = out[:, :M_raw, :].reshape(N, Hp, Wp, Cout)[:, 1:H + 1, 1:W + 1, :]
    return jnp.transpose(out, (0, 3, 1, 2)).astype(x_nchw.dtype)     # back to NCHW


# ----------------------------------------------------------------------------
# pure-JAX reference (mirrors the PyTorch forward, eval-mode BN)
# ----------------------------------------------------------------------------
def basic_block_reference(x, params, eps=1e-5):
    (w1, g1, be1, rm1, rv1, w2, g2, be2, rm2, rv2) = params

    def conv(x, w):
        return lax.conv_general_dilated(
            x, w, window_strides=(1, 1), padding=((1, 1), (1, 1)),
            dimension_numbers=('NCHW', 'OIHW', 'NCHW'),
            precision=lax.Precision.HIGHEST)

    def bn(x, g, b, rm, rv):
        sh = (1, -1, 1, 1)
        return ((x - rm.reshape(sh)) * (g.reshape(sh) / jnp.sqrt(rv.reshape(sh) + eps))
                + b.reshape(sh))

    out = jax.nn.relu(bn(conv(x, w1), g1, be1, rm1, rv1))
    out = bn(conv(out, w2), g2, be2, rm2, rv2)
    return jax.nn.relu(out + x)


if __name__ == "__main__":
    key = jax.random.PRNGKey(0)
    N, C, H, W = 2, 8, 16, 16          # inplanes == planes == 8, stride == 1
    ks = jax.random.split(key, 11)

    x = jax.random.normal(ks[0], (N, C, H, W), jnp.float32)
    w1 = 0.1 * jax.random.normal(ks[1], (C, C, 3, 3), jnp.float32)
    w2 = 0.1 * jax.random.normal(ks[2], (C, C, 3, 3), jnp.float32)
    g1 = 1.0 + 0.1 * jax.random.normal(ks[3], (C,), jnp.float32)
    be1 = 0.1 * jax.random.normal(ks[4], (C,), jnp.float32)
    rm1 = 0.05 * jax.random.normal(ks[5], (C,), jnp.float32)
    rv1 = 1.0 + 0.1 * jnp.abs(jax.random.normal(ks[6], (C,), jnp.float32))
    g2 = 1.0 + 0.1 * jax.random.normal(ks[7], (C,), jnp.float32)
    be2 = 0.1 * jax.random.normal(ks[8], (C,), jnp.float32)
    rm2 = 0.05 * jax.random.normal(ks[9], (C,), jnp.float32)
    rv2 = 1.0 + 0.1 * jnp.abs(jax.random.normal(ks[10], (C,), jnp.float32))
    params = (w1, g1, be1, rm1, rv1, w2, g2, be2, rm2, rv2)

    out = jax.block_until_ready(basic_block_pallas(x, params))
    ref = jax.block_until_ready(basic_block_reference(x, params))

    assert out.shape == (N, C, H, W)
    err = float(jnp.max(jnp.abs(out - ref)))
    assert np.isfinite(err) and err < 5e-2, f"max abs err = {err}"
    print("KERNEL_OK")
</pallas_src>

<mosaic_0001>
module attributes {stable_mosaic.version = 11 : i64} {
  func.func @kernel(%arg0: i32, %arg1: memref<1x40x144xf32, #tpu.memory_space<vmem>>, %arg2: memref<3x144x144xbf16, #tpu.memory_space<vmem>>, %arg3: memref<1x144xf32, #tpu.memory_space<vmem>>, %arg4: memref<3x144x144xbf16, #tpu.memory_space<vmem>>, %arg5: memref<1x144xf32, #tpu.memory_space<vmem>>, %arg6: memref<40x1xf32, #tpu.memory_space<vmem>>, %arg7: memref<1x40x144xf32, #tpu.memory_space<vmem>>) attributes {dimension_semantics = [#tpu.dimension_semantics<parallel>], iteration_bounds = array<i64: 1>, scalar_prefetch = 0 : i64, scratch_operands = 0 : i64, tpu.core_type = #tpu.core_type<tc>, window_params = [{transform_indices = @transform_0, window_bounds = array<i64: 1, 40, 144>}, {pipeline_mode = #tpu.pipeline_mode<synchronous>, transform_indices = @transform_1, window_bounds = array<i64: 3, 144, 144>}, {pipeline_mode = #tpu.pipeline_mode<synchronous>, transform_indices = @transform_2, window_bounds = array<i64: 1, 144>}, {pipeline_mode = #tpu.pipeline_mode<synchronous>, transform_indices = @transform_3, window_bounds = array<i64: 3, 144, 144>}, {pipeline_mode = #tpu.pipeline_mode<synchronous>, transform_indices = @transform_4, window_bounds = array<i64: 1, 144>}, {pipeline_mode = #tpu.pipeline_mode<synchronous>, transform_indices = @transform_5, window_bounds = array<i64: 40, 1>}, {transform_indices = @transform_6, window_bounds = array<i64: 1, 40, 144>}]} {
    %c0 = arith.constant 0 : index
    %c0_0 = arith.constant 0 : index
    %c0_1 = arith.constant 0 : index
    %0 = vector.load %arg1[%c0, %c0_0, %c0_1] : memref<1x40x144xf32, #tpu.memory_space<vmem>>, vector<1x40x144xf32>
    %1 = vector.shape_cast %0 : vector<1x40x144xf32> to vector<40x144xf32>
    %2 = arith.truncf %1 : vector<40x144xf32> to vector<40x144xbf16>
    %c0_2 = arith.constant 0 : index
    %c0_3 = arith.constant 0 : index
    %3 = vector.load %arg6[%c0_2, %c0_3] : memref<40x1xf32, #tpu.memory_space<vmem>>, vector<40x1xf32>
    %c0_4 = arith.constant 0 : index
    %c0_5 = arith.constant 0 : index
    %c0_6 = arith.constant 0 : index
    %4 = vector.load %arg2[%c0_4, %c0_5, %c0_6] : memref<3x144x144xbf16, #tpu.memory_space<vmem>>, vector<1x144x144xbf16>
    %5 = vector.shape_cast %4 : vector<1x144x144xbf16> to vector<144x144xbf16>
    %cst = arith.constant dense<0.000000e+00> : vector<40x144xf32>
    %6 = tpu.matmul %2, %5, %cst {dimension_numbers = #tpu.dot_dimension_numbers<[1], [0], [0], [1], [0, 0, 1, 1], [], []>} : vector<40x144xbf16>, vector<144x144xbf16>, vector<40x144xf32> -> vector<40x144xf32>
    %c1 = arith.constant 1 : index
    %c0_7 = arith.constant 0 : index
    %c0_8 = arith.constant 0 : index
    %7 = vector.load %arg2[%c1, %c0_7, %c0_8] : memref<3x144x144xbf16, #tpu.memory_space<vmem>>, vector<1x144x144xbf16>
    %8 = vector.shape_cast %7 : vector<1x144x144xbf16> to vector<144x144xbf16>
    %cst_9 = arith.constant dense<0.000000e+00> : vector<40x144xf32>
    %9 = tpu.matmul %2, %8, %cst_9 {dimension_numbers = #tpu.dot_dimension_numbers<[1], [0], [0], [1], [0, 0, 1, 1], [], []>} : vector<40x144xbf16>, vector<144x144xbf16>, vector<40x144xf32> -> vector<40x144xf32>
    %c2 = arith.constant 2 : index
    %c0_10 = arith.constant 0 : index
    %c0_11 = arith.constant 0 : index
    %10 = vector.load %arg2[%c2, %c0_10, %c0_11] : memref<3x144x144xbf16, #tpu.memory_space<vmem>>, vector<1x144x144xbf16>
    %11 = vector.shape_cast %10 : vector<1x144x144xbf16> to vector<144x144xbf16>
    %cst_12 = arith.constant dense<0.000000e+00> : vector<40x144xf32>
    %12 = tpu.matmul %2, %11, %cst_12 {dimension_numbers = #tpu.dot_dimension_numbers<[1], [0], [0], [1], [0, 0, 1, 1], [], []>} : vector<40x144xbf16>, vector<144x144xbf16>, vector<40x144xf32> -> vector<40x144xf32>
    %c1_i32 = arith.constant 1 : i32
    %13 = tpu.dynamic_rotate %6 by %c1_i32 dim 0 : vector<40x144xf32>, i32 -> vector<40x144xf32>
    %c39_i32 = arith.constant 39 : i32
    %14 = tpu.dynamic_rotate %12 by %c39_i32 dim 0 : vector<40x144xf32>, i32 -> vector<40x144xf32>
    %15 = arith.addf %9, %13 : vector<40x144xf32>
    %16 = arith.addf %15, %14 : vector<40x144xf32>
    %c0_13 = arith.constant 0 : index
    %c0_14 = arith.constant 0 : index
    %17 = vector.load %arg3[%c0_13, %c0_14] : memref<1x144xf32, #tpu.memory_space<vmem>>, vector<1x144xf32>
    %18 = vector.broadcast %17 : vector<1x144xf32> to vector<40x144xf32>
    %19 = arith.addf %16, %18 : vector<40x144xf32>
    %cst_15 = arith.constant 0.000000e+00 : f32
    %20 = vector.broadcast %cst_15 : f32 to vector<40x144xf32>
    %21 = arith.maximumf %19, %20 : vector<40x144xf32>
    %22 = vector.broadcast %3 : vector<40x1xf32> to vector<40x144xf32>
    %23 = arith.mulf %21, %22 : vector<40x144xf32>
    %24 = arith.truncf %23 : vector<40x144xf32> to vector<40x144xbf16>
    %c0_16 = arith.constant 0 : index
    %c0_17 = arith.constant 0 : index
    %c0_18 = arith.constant 0 : index
    %25 = vector.load %arg4[%c0_16, %c0_17, %c0_18] : memref<3x144x144xbf16, #tpu.memory_space<vmem>>, vector<1x144x144xbf16>
    %26 = vector.shape_cast %25 : vector<1x144x144xbf16> to vector<144x144xbf16>
    %cst_19 = arith.constant dense<0.000000e+00> : vector<40x144xf32>
    %27 = tpu.matmul %24, %26, %cst_19 {dimension_numbers = #tpu.dot_dimension_numbers<[1], [0], [0], [1], [0, 0, 1, 1], [], []>} : vector<40x144xbf16>, vector<144x144xbf16>, vector<40x144xf32> -> vector<40x144xf32>
    %c1_20 = arith.constant 1 : index
    %c0_21 = arith.constant 0 : index
    %c0_22 = arith.constant 0 : index
    %28 = vector.load %arg4[%c1_20, %c0_21, %c0_22] : memref<3x144x144xbf16, #tpu.memory_space<vmem>>, vector<1x144x144xbf16>
    %29 = vector.shape_cast %28 : vector<1x144x144xbf16> to vector<144x144xbf16>
    %cst_23 = arith.constant dense<0.000000e+00> : vector<40x144xf32>
    %30 = tpu.matmul %24, %29, %cst_23 {dimension_numbers = #tpu.dot_dimension_numbers<[1], [0], [0], [1], [0, 0, 1, 1], [], []>} : vector<40x144xbf16>, vector<144x144xbf16>, vector<40x144xf32> -> vector<40x144xf32>
    %c2_24 = arith.constant 2 : index
    %c0_25 = arith.constant 0 : index
    %c0_26 = arith.constant 0 : index
    %31 = vector.load %arg4[%c2_24, %c0_25, %c0_26] : memref<3x144x144xbf16, #tpu.memory_space<vmem>>, vector<1x144x144xbf16>
    %32 = vector.shape_cast %31 : vector<1x144x144xbf16> to vector<144x144xbf16>
    %cst_27 = arith.constant dense<0.000000e+00> : vector<40x144xf32>
    %33 = tpu.matmul %24, %32, %cst_27 {dimension_numbers = #tpu.dot_dimension_numbers<[1], [0], [0], [1], [0, 0, 1, 1], [], []>} : vector<40x144xbf16>, vector<144x144xbf16>, vector<40x144xf32> -> vector<40x144xf32>
    %c1_i32_28 = arith.constant 1 : i32
    %34 = tpu.dynamic_rotate %27 by %c1_i32_28 dim 0 : vector<40x144xf32>, i32 -> vector<40x144xf32>
    %c39_i32_29 = arith.constant 39 : i32
    %35 = tpu.dynamic_rotate %33 by %c39_i32_29 dim 0 : vector<40x144xf32>, i32 -> vector<40x144xf32>
    %36 = arith.addf %30, %34 : vector<40x144xf32>
    %37 = arith.addf %36, %35 : vector<40x144xf32>
    %c0_30 = arith.constant 0 : index
    %c0_31 = arith.constant 0 : index
    %38 = vector.load %arg5[%c0_30, %c0_31] : memref<1x144xf32, #tpu.memory_space<vmem>>, vector<1x144xf32>
    %39 = vector.broadcast %38 : vector<1x144xf32> to vector<40x144xf32>
    %40 = arith.addf %37, %39 : vector<40x144xf32>
    %41 = arith.addf %40, %1 : vector<40x144xf32>
    %cst_32 = arith.constant 0.000000e+00 : f32
    %42 = vector.broadcast %cst_32 : f32 to vector<40x144xf32>
    %43 = arith.maximumf %41, %42 : vector<40x144xf32>
    %c0_33 = arith.constant 0 : index
    %c0_34 = arith.constant 0 : index
    %c0_35 = arith.constant 0 : index
    %44 = vector.load %arg7[%c0_33, %c0_34, %c0_35] : memref<1x40x144xf32, #tpu.memory_space<vmem>>, vector<1x40x144xf32>
    %45 = vector.shape_cast %44 : vector<1x40x144xf32> to vector<40x144xf32>
    %46 = vector.shape_cast %43 : vector<40x144xf32> to vector<1x40x144xf32>
    tpu.vector_store %arg7[%c0_33, %c0_34, %c0_35], %46 {strides = array<i32>} : memref<1x40x144xf32, #tpu.memory_space<vmem>>, vector<1x40x144xf32>,
    return
  }
  func.func @transform_0(%arg0: i32) -> (i32, i32, i32) {
    %c0_i32 = arith.constant 0 : i32
    %c0_i32_0 = arith.constant 0 : i32
    %c0_i32_1 = arith.constant 0 : i32
    return %arg0, %c0_i32, %c0_i32_0 : i32, i32, i32
  }
  func.func @transform_1(%arg0: i32) -> (i32, i32, i32) {
    %c0_i32 = arith.constant 0 : i32
    %c0_i32_0 = arith.constant 0 : i32
    %c0_i32_1 = arith.constant 0 : i32
    %c0_i32_2 = arith.constant 0 : i32
    return %c0_i32, %c0_i32_0, %c0_i32_1 : i32, i32, i32
  }
  func.func @transform_2(%arg0: i32) -> (i32, i32) {
    %c0_i32 = arith.constant 0 : i32
    %c0_i32_0 = arith.constant 0 : i32
    %c0_i32_1 = arith.constant 0 : i32
    return %c0_i32, %c0_i32_0 : i32, i32
  }
  func.func @transform_3(%arg0: i32) -> (i32, i32, i32) {
    %c0_i32 = arith.constant 0 : i32
    %c0_i32_0 = arith.constant 0 : i32
    %c0_i32_1 = arith.constant 0 : i32
    %c0_i32_2 = arith.constant 0 : i32
    return %c0_i32, %c0_i32_0, %c0_i32_1 : i32, i32, i32
  }
  func.func @transform_4(%arg0: i32) -> (i32, i32) {
    %c0_i32 = arith.constant 0 : i32
    %c0_i32_0 = arith.constant 0 : i32
    %c0_i32_1 = arith.constant 0 : i32
    return %c0_i32, %c0_i32_0 : i32, i32
  }
  func.func @transform_5(%arg0: i32) -> (i32, i32) {
    %c0_i32 = arith.constant 0 : i32
    %c0_i32_0 = arith.constant 0 : i32
    %c0_i32_1 = arith.constant 0 : i32
    return %c0_i32, %c0_i32_0 : i32, i32
  }
  func.func @transform_6(%arg0: i32) -> (i32, i32, i32) {
    %c0_i32 = arith.constant 0 : i32
    %c0_i32_0 = arith.constant 0 : i32
    %c0_i32_1 = arith.constant 0 : i32
    return %arg0, %c0_i32, %c0_i32_0 : i32, i32, i32
  }
}

</mosaic_0001>

<llo_original>
// kernel: tpu_custom_call.1
$region0: #{tpu_custom_call.1}
  #allocation0 [shape = 'u32[]', space=smem, size = 0x4, offset = 0x4, fixed_abs, tag = 'smem constant byte address 0x4 - core index']
  #allocation1 [shape = 'u32[144,128]{1,0:T(1,128)}', space=vmem, size = 0x12000, scoped, tag = 'internal scratch']
  %s0 = inlined_call_operand.hbm [shape: f32[1,40,144], index: 0, kind: input, shape index: {}]
  %s1 = inlined_call_operand.hbm [shape: bf16[3,144,144], index: 1, kind: input, shape index: {}]
  %s2 = inlined_call_operand.vmem [shape: f32[1,144], index: 2, kind: input, shape index: {}]
  %s3 = inlined_call_operand.hbm [shape: bf16[3,144,144], index: 3, kind: input, shape index: {}]
  %s4 = inlined_call_operand.vmem [shape: f32[1,144], index: 4, kind: input, shape index: {}]
  %s5 = inlined_call_operand.vmem [shape: f32[40,1], index: 5, kind: input, shape index: {}]
  %s6 = inlined_call_operand.hbm [shape: f32[1,40,144], index: 6, kind: output, shape index: {}]
  %s7 = sld [smem:[#allocation0]]
  $region46: #{tpu_custom_call.1} parent=0
    _
  %s9 = ssub.s32 1, %s7
  %s10 = scalar_select 0, %s9, %s7
  $region1: #{tpu_custom_call.1} parent=0
    #allocation2 [shape = 'u8[40960]{0}', space=vmem, size = 0xa000, scoped, tag = 'input window, operand 0, single buffered']
    #allocation3 [shape = 's32[1]{0}', space=sflag, size = 0x4, scoped, tag = 'scoped memory for tpu_custom_call.1']
    #allocation4 [shape = 's32[1]{0}', space=sflag, size = 0x4, scoped, tag = 'scoped memory for tpu_custom_call.1']
    #allocation5 [shape = 'u8[221184]{0}', space=vmem, size = 0x36000, scoped, tag = 'input window, operand 1, single buffered']
    #allocation6 [shape = 's32[1]{0}', space=sflag, size = 0x4, scoped, tag = 'scoped memory for tpu_custom_call.1']
    #allocation7 [shape = 'u8[221184]{0}', space=vmem, size = 0x36000, scoped, tag = 'input window, operand 3, single buffered']
    #allocation8 [shape = 'u8[40960]{0}', space=vmem, size = 0xa000, scoped, tag = 'output window, operand 0, single buffered']
    %11 = vsyncpa [#allocation3], 0
    %12 = vsyncpa [#allocation6], 0
    %13 = vsyncpa [#allocation4], 0
    // Predicated region
    $region2: #{tpu_custom_call.1} parent=1 // pred_check
      _
    $region3: #{tpu_custom_call.1} parent=1 // pred_check_branch
      %15 = sbr.rel (0) target = $region5
    $region4: #{tpu_custom_call.1} parent=1 // pred_region
      %s17 = ssub.s32 1280, 1280
      %18 = vsyncadd [#allocation3], %s17
      %s19 = sshll.u32 [#allocation2], 4
      %s20 = int_to_ptr.vmem [resolvable:$true] %s19
      %25 = dma.hbm_to_vmem [thread:$0]  %s0, 1280, %s20, [#allocation3], 256, 256, 16
    $region5: #{tpu_custom_call.1} parent=1 // pred_fallthru
      _
    // Predicated region
    $region6: #{tpu_custom_call.1} parent=1 // pred_check
      _
    $region7: #{tpu_custom_call.1} parent=1 // pred_check_branch
      %27 = sbr.rel (0) target = $region9
    $region8: #{tpu_custom_call.1} parent=1 // pred_region
      %s29 = ssub.s32 6912, 6912
      %30 = vsyncadd [#allocation6], %s29
      %s31 = sshll.u32 [#allocation5], 4
      %s32 = int_to_ptr.vmem [resolvable:$true] %s31
      %37 = dma.hbm_to_vmem [thread:$0]  %s1, 6912, %s32, [#allocation6], 128, 128, 8
    $region9: #{tpu_custom_call.1} parent=1 // pred_fallthru
      _
    // Predicated region
    $region10: #{tpu_custom_call.1} parent=1 // pred_check
      _
    $region11: #{tpu_custom_call.1} parent=1 // pred_check_branch
      %39 = sbr.rel (0) target = $region13
    $region12: #{tpu_custom_call.1} parent=1 // pred_region
      _
    $region13: #{tpu_custom_call.1} parent=1 // pred_fallthru
      _
    // Predicated region
    $region14: #{tpu_custom_call.1} parent=1 // pred_check
      _
    $region15: #{tpu_custom_call.1} parent=1 // pred_check_branch
      %41 = sbr.rel (0) target = $region17
    $region16: #{tpu_custom_call.1} parent=1 // pred_region
      %s43 = ssub.s32 6912, 6912
      %44 = vsyncadd [#allocation6], %s43
      %s45 = sshll.u32 [#allocation7], 4
      %s46 = int_to_ptr.vmem [resolvable:$true] %s45
      %51 = dma.hbm_to_vmem [thread:$0]  %s3, 6912, %s46, [#allocation6], 128, 128, 8
    $region17: #{tpu_custom_call.1} parent=1 // pred_fallthru
      _
    // Predicated region
    $region18: #{tpu_custom_call.1} parent=1 // pred_check
      _
    $region19: #{tpu_custom_call.1} parent=1 // pred_check_branch
      %53 = sbr.rel (0) target = $region21
    $region20: #{tpu_custom_call.1} parent=1 // pred_region
      _
    $region21: #{tpu_custom_call.1} parent=1 // pred_fallthru
      _
    // Predicated region
    $region22: #{tpu_custom_call.1} parent=1 // pred_check
      _
    $region23: #{tpu_custom_call.1} parent=1 // pred_check_branch
      %55 = sbr.rel (0) target = $region25
    $region24: #{tpu_custom_call.1} parent=1 // pred_region
      _
    $region25: #{tpu_custom_call.1} parent=1 // pred_fallthru
      _
    // Predicated region
    $region26: #{tpu_custom_call.1} parent=1 // pred_check
      _
    $region27: #{tpu_custom_call.1} parent=1 // pred_check_branch
      %57 = sbr.rel (0) target = $region29
    $region28: #{tpu_custom_call.1} parent=1 // pred_region
      %58 = dma.done [#allocation3], 1280
    $region29: #{tpu_custom_call.1} parent=1 // pred_fallthru
      _
    // Predicated region
    $region30: #{tpu_custom_call.1} parent=1 // pred_check
      _
    $region31: #{tpu_custom_call.1} parent=1 // pred_check_branch
      %60 = sbr.rel (0) target = $region33
    $region32: #{tpu_custom_call.1} parent=1 // pred_region
      %61 = dma.done [#allocation6], 6912
    $region33: #{tpu_custom_call.1} parent=1 // pred_fallthru
      _
    // Predicated region
    $region34: #{tpu_custom_call.1} parent=1 // pred_check
      _
    $region35: #{tpu_custom_call.1} parent=1 // pred_check_branch
      %63 = sbr.rel (0) target = $region37
    $region36: #{tpu_custom_call.1} parent=1 // pred_region
      %64 = dma.done [#allocation6], 6912
    $region37: #{tpu_custom_call.1} parent=1 // pred_fallthru
      _
    %v66 = vld [vmem:[#allocation2] sm:$0xff]
    %v67 = vld [vmem:[#allocation2 + $0x8] sm:$0xff]
    %v68 = vld [vmem:[#allocation2 + $0x10] sm:$0xff]
    %v69 = vld [vmem:[#allocation2 + $0x18] sm:$0xff]
    %v70 = vld [vmem:[#allocation2 + $0x20] sm:$0xff]
    %v71 = vld [vmem:[#allocation2 + $0x28] sm:$0xff]
    %v72 = vld [vmem:[#allocation2 + $0x30] sm:$0xff]
    %v73 = vld [vmem:[#allocation2 + $0x38] sm:$0xff]
    %v74 = vld [vmem:[#allocation2 + $0x40] sm:$0xff]
    %v75 = vld [vmem:[#allocation2 + $0x48] sm:$0xff]
    %v76 = vpack.c.bf16 %v68, %v66
    %v77 = vpack.c.bf16 %v69, %v67
    %v78 = vpack.c.bf16 %v72, %v70
    %v79 = vpack.c.bf16 %v73, %v71
    %v80 = vpack.c.bf16 %v74, %v74
    %v81 = vpack.c.bf16 %v75, %v75
    %v82 = vld [vmem:[%s5] sm:$0xff]
    %v83 = vld [vmem:[%s5 + $0x8] sm:$0xff]
    %v84 = vld [vmem:[%s5 + $0x10] sm:$0xff]
    %v85 = vld [vmem:[%s5 + $0x18] sm:$0xff]
    %v86 = vld [vmem:[%s5 + $0x20] sm:$0xff]
    %v87 = vld [vmem:[#allocation5] sm:$0xff]
    %v88 = vld [vmem:[#allocation5 + $0x8] sm:$0xff]
    %v89 = vld [vmem:[#allocation5 + $0x10] sm:$0xff]
    %v90 = vld [vmem:[#allocation5 + $0x18] sm:$0xff]
    %v91 = vld [vmem:[#allocation5 + $0x20] sm:$0xff]
    %v92 = vld [vmem:[#allocation5 + $0x28] sm:$0xff]
    %v93 = vld [vmem:[#allocation5 + $0x30] sm:$0xff]
    %v94 = vld [vmem:[#allocation5 + $0x38] sm:$0xff]
    %v95 = vld [vmem:[#allocation5 + $0x40] sm:$0xff]
    %v96 = vld [vmem:[#allocation5 + $0x48] sm:$0xff]
    %v97 = vld [vmem:[#allocation5 + $0x50] sm:$0xff]
    %v98 = vld [vmem:[#allocation5 + $0x58] sm:$0xff]
    %v99 = vld [vmem:[#allocation5 + $0x60] sm:$0xff]
    %v100 = vld [vmem:[#allocation5 + $0x68] sm:$0xff]
    %v101 = vld [vmem:[#allocation5 + $0x70] sm:$0xff]
    %v102 = vld [vmem:[#allocation5 + $0x78] sm:$0xff]
    %v103 = vld [vmem:[#allocation5 + $0x80] sm:$0xff]
    %v104 = vld [vmem:[#allocation5 + $0x88] sm:$0xff]
    %v123 = vunpack.c.l.b16 %v87
    %v124 = vunpack.c.h.b16 %v87
    %v125 = vunpack.c.l.b16 %v88
    %v126 = vunpack.c.h.b16 %v88
    %v127 = vunpack.c.l.b16 %v89
    %v128 = vunpack.c.h.b16 %v89
    %v129 = vunpack.c.l.b16 %v90
    %v130 = vunpack.c.h.b16 %v90
    %v131 = vunpack.c.l.b16 %v91
    %v132 = vunpack.c.h.b16 %v91
    %v133 = vunpack.c.l.b16 %v92
    %v134 = vunpack.c.h.b16 %v92
    %v135 = vunpack.c.l.b16 %v93
    %v136 = vunpack.c.h.b16 %v93
    %v137 = vunpack.c.l.b16 %v94
    %v138 = vunpack.c.h.b16 %v94
    %v139 = vunpack.c.l.b16 %v95
    %v140 = vunpack.c.h.b16 %v95
    %v141 = vunpack.c.l.b16 %v96
    %v142 = vunpack.c.h.b16 %v96
    %v143 = vunpack.c.l.b16 %v97
    %v144 = vunpack.c.h.b16 %v97
    %v145 = vunpack.c.l.b16 %v98
    %v146 = vunpack.c.h.b16 %v98
    %v147 = vunpack.c.l.b16 %v99
    %v148 = vunpack.c.h.b16 %v99
    %v149 = vunpack.c.l.b16 %v100
    %v150 = vunpack.c.h.b16 %v100
    %v151 = vunpack.c.l.b16 %v101
    %v152 = vunpack.c.h.b16 %v101
    %v153 = vunpack.c.l.b16 %v102
    %v154 = vunpack.c.h.b16 %v102
    %v155 = vunpack.c.l.b16 %v103
    %v156 = vunpack.c.h.b16 %v103
    %v157 = vunpack.c.l.b16 %v104
    %v158 = vunpack.c.h.b16 %v104
    %v159 = vpack.c.b16 %v125, %v123
    %v160 = vpack.c.b16 %v126, %v124
    %v161 = vpack.c.b16 %v129, %v127
    %v162 = vpack.c.b16 %v130, %v128
    %v163 = vpack.c.b16 %v133, %v131
    %v164 = vpack.c.b16 %v134, %v132
    %v165 = vpack.c.b16 %v137, %v135
    %v166 = vpack.c.b16 %v138, %v136
    %v167 = vpack.c.b16 %v141, %v139
    %v168 = vpack.c.b16 %v142, %v140
    %v169 = vpack.c.b16 %v145, %v143
    %v170 = vpack.c.b16 %v146, %v144
    %v171 = vpack.c.b16 %v149, %v147
    %v172 = vpack.c.b16 %v150, %v148
    %v173 = vpack.c.b16 %v153, %v151
    %v174 = vpack.c.b16 %v154, %v152
    %v175 = vpack.c.b16 %v157, %v155
    %v176 = vpack.c.b16 %v158, %v156
    %vm195 = vcmask 130048
    %v197 = vsel %vm195, %v77, 0
    %v200 = vsel %vm195, %v79, 0
    %v203 = vsel %vm195, %v81, 0
    %205 = vmatprep.subr.bf16.mxu0 %v160
    %206 = vmatpush1.bf16.msra.mxu0 %v159
    %207 = vmatprep.subr.bf16.mxu0 %v162
    %208 = vmatpush1.bf16.msra.mxu0 %v161
    %209 = vmatprep.subr.bf16.mxu0 %v164
    %210 = vmatpush1.bf16.msra.mxu0 %v163
    %211 = vmatprep.subr.bf16.mxu0 %v166
    %212 = vmatpush1.bf16.msra.mxu0 %v165
    %213 = vmatprep.subr.bf16.mxu0 %v168
    %214 = vmatpush1.bf16.msra.mxu0 %v167
    %215 = vmatprep.subr.bf16.mxu0 %v170
    %216 = vmatpush1.bf16.msra.mxu0 %v169
    %217 = vmatprep.subr.bf16.mxu0 %v172
    %218 = vmatpush1.bf16.msra.mxu0 %v171
    %219 = vmatprep.subr.bf16.mxu0 %v174
    %220 = vmatpush1.bf16.msra.mxu0 %v173
    %221 = vmatprep.subr.bf16.mxu0 %v176
    %222 = vmatpush1.bf16.msra.mxu0 %v175
    %223 = vmatprep.subr.bf16.mxu0 0
    %224 = vmatpush1.bf16.msra.mxu0 0
    %225 = vmatprep.subr.bf16.mxu0 0
    %226 = vmatpush1.bf16.msra.mxu0 0
    %227 = vmatprep.subr.bf16.mxu0 0
    %228 = vmatpush1.bf16.msra.mxu0 0
    %229 = vmatprep.subr.bf16.mxu0 0
    %230 = vmatpush1.bf16.msra.mxu0 0
    %231 = vmatprep.subr.bf16.mxu0 0
    %232 = vmatpush1.bf16.msra.mxu0 0
    %233 = vmatprep.subr.bf16.mxu0 0
    %234 = vmatpush1.bf16.msra.mxu0 0
    %235 = vmatprep.subr.bf16.mxu0 0
    %236 = vmatpush1.bf16.msra.mxu0 0
    %237 = vmatprep.mubr.bf16.mxu0 %v197
    %238 = vmatmul.mubr.bf16.gmra.mrb[0].mxu0 %v76
    %v239 = vpop.f32.mrb[0].mxu0
    %v240 = vadd.f32 0.0, %v239
    %v241 = vpop.f32.mrb[0].mxu0
    %v242 = vadd.f32 0.0, %v241
    %v243 = vpop.f32.mrb[0].mxu0
    %v244 = vadd.f32 0.0, %v243
    %v245 = vpop.f32.mrb[0].mxu0
    %v246 = vadd.f32 0.0, %v245
    %247 = vmatprep.mubr.bf16.mxu0 %v200
    %248 = vmatmul.mubr.bf16.gmra.mrb[0].mxu0 %v78
    %v249 = vpop.f32.mrb[0].mxu0
    %v250 = vadd.f32 0.0, %v249
    %v251 = vpop.f32.mrb[0].mxu0
    %v252 = vadd.f32 0.0, %v251
    %v253 = vpop.f32.mrb[0].mxu0
    %v254 = vadd.f32 0.0, %v253
    %v255 = vpop.f32.mrb[0].mxu0
    %v256 = vadd.f32 0.0, %v255
    %257 = vmatprep.mubr.bf16.mxu0 %v203
    %258 = vmatmul.mubr.bf16.gmra.mrb[0].mxu0 %v80
    %v259 = vpop.f32.mrb[0].mxu0
    %v260 = vadd.f32 0.0, %v259
    %v261 = vpop.f32.mrb[0].mxu0
    %v262 = vadd.f32 0.0, %v261
    %v263 = vpop.f32.mrb[0].mxu0
    %v264 = vpop.f32.mrb[0].mxu0
    %265 = vdwg.mxu0
    %s266 = scalar_lea.vmem [#allocation5], 144
    %v267 = vld [vmem:[%s266] sm:$0xff]
    %v268 = vld [vmem:[%s266 + $0x8] sm:$0xff]
    %v269 = vld [vmem:[%s266 + $0x10] sm:$0xff]
    %v270 = vld [vmem:[%s266 + $0x18] sm:$0xff]
    %v271 = vld [vmem:[%s266 + $0x20] sm:$0xff]
    %v272 = vld [vmem:[%s266 + $0x28] sm:$0xff]
    %v273 = vld [vmem:[%s266 + $0x30] sm:$0xff]
    %v274 = vld [vmem:[%s266 + $0x38] sm:$0xff]
    %v275 = vld [vmem:[%s266 + $0x40] sm:$0xff]
    %v276 = vld [vmem:[%s266 + $0x48] sm:$0xff]
    %v277 = vld [vmem:[%s266 + $0x50] sm:$0xff]
    %v278 = vld [vmem:[%s266 + $0x58] sm:$0xff]
    %v279 = vld [vmem:[%s266 + $0x60] sm:$0xff]
    %v280 = vld [vmem:[%s266 + $0x68] sm:$0xff]
    %v281 = vld [vmem:[%s266 + $0x70] sm:$0xff]
    %v282 = vld [vmem:[%s266 + $0x78] sm:$0xff]
    %v283 = vld [vmem:[%s266 + $0x80] sm:$0xff]
    %v284 = vld [vmem:[%s266 + $0x88] sm:$0xff]
    %s285 = scalar_lea.vmem [#allocation5], 288
    %v286 = vld [vmem:[%s285] sm:$0xff]
    %v287 = vld [vmem:[%s285 + $0x8] sm:$0xff]
    %v288 = vld [vmem:[%s285 + $0x10] sm:$0xff]
    %v289 = vld [vmem:[%s285 + $0x18] sm:$0xff]
    %v290 = vld [vmem:[%s285 + $0x20] sm:$0xff]
    %v291 = vld [vmem:[%s285 + $0x28] sm:$0xff]
    %v292 = vld [vmem:[%s285 + $0x30] sm:$0xff]
    %v293 = vld [vmem:[%s285 + $0x38] sm:$0xff]
    %v294 = vld [vmem:[%s285 + $0x40] sm:$0xff]
    %v295 = vld [vmem:[%s285 + $0x48] sm:$0xff]
    %v296 = vld [vmem:[%s285 + $0x50] sm:$0xff]
    %v297 = vld [vmem:[%s285 + $0x58] sm:$0xff]
    %v298 = vld [vmem:[%s285 + $0x60] sm:$0xff]
    %v299 = vld [vmem:[%s285 + $0x68] sm:$0xff]
    %v300 = vld [vmem:[%s285 + $0x70] sm:$0xff]
    %v301 = vld [vmem:[%s285 + $0x78] sm:$0xff]
    %v302 = vld [vmem:[%s285 + $0x80] sm:$0xff]
    %v303 = vld [vmem:[%s285 + $0x88] sm:$0xff]
    %v322 = vunpack.c.l.b16 %v286
    %v323 = vunpack.c.h.b16 %v286
    %v324 = vunpack.c.l.b16 %v287
    %v325 = vunpack.c.h.b16 %v287
    %v326 = vunpack.c.l.b16 %v288
    %v327 = vunpack.c.h.b16 %v288
    %v328 = vunpack.c.l.b16 %v289
    %v329 = vunpack.c.h.b16 %v289
    %v330 = vunpack.c.l.b16 %v290
    %v331 = vunpack.c.h.b16 %v290
    %v332 = vunpack.c.l.b16 %v291
    %v333 = vunpack.c.h.b16 %v291
    %v334 = vunpack.c.l.b16 %v292
    %v335 = vunpack.c.h.b16 %v292
    %v336 = vunpack.c.l.b16 %v293
    %v337 = vunpack.c.h.b16 %v293
    %v338 = vunpack.c.l.b16 %v294
    %v339 = vunpack.c.h.b16 %v294
    %v340 = vunpack.c.l.b16 %v295
    %v341 = vunpack.c.h.b16 %v295
    %v342 = vunpack.c.l.b16 %v296
    %v343 = vunpack.c.h.b16 %v296
    %v344 = vunpack.c.l.b16 %v297
    %v345 = vunpack.c.h.b16 %v297
    %v346 = vunpack.c.l.b16 %v298
    %v347 = vunpack.c.h.b16 %v298
    %v348 = vunpack.c.l.b16 %v299
    %v349 = vunpack.c.h.b16 %v299
    %v350 = vunpack.c.l.b16 %v300
    %v351 = vunpack.c.h.b16 %v300
    %v352 = vunpack.c.l.b16 %v301
    %v353 = vunpack.c.h.b16 %v301
    %v354 = vunpack.c.l.b16 %v302
    %v355 = vunpack.c.h.b16 %v302
    %v356 = vunpack.c.l.b16 %v303
    %v357 = vunpack.c.h.b16 %v303
    %v358 = vpack.c.b16 %v324, %v322
    %v359 = vpack.c.b16 %v325, %v323
    %v360 = vpack.c.b16 %v328, %v326
    %v361 = vpack.c.b16 %v329, %v327
    %v362 = vpack.c.b16 %v332, %v330
    %v363 = vpack.c.b16 %v333, %v331
    %v364 = vpack.c.b16 %v336, %v334
    %v365 = vpack.c.b16 %v337, %v335
    %v366 = vpack.c.b16 %v340, %v338
    %v367 = vpack.c.b16 %v341, %v339
    %v368 = vpack.c.b16 %v344, %v342
    %v369 = vpack.c.b16 %v345, %v343
    %v370 = vpack.c.b16 %v348, %v346
    %v371 = vpack.c.b16 %v349, %v347
    %v372 = vpack.c.b16 %v352, %v350
    %v373 = vpack.c.b16 %v353, %v351
    %v374 = vpack.c.b16 %v356, %v354
    %v375 = vpack.c.b16 %v357, %v355
    %394 = vmatprep.subr.bf16.mxu0 %v359
    %395 = vmatpush1.bf16.msra.mxu0 %v358
    %396 = vmatprep.subr.bf16.mxu0 %v361
    %397 = vmatpush1.bf16.msra.mxu0 %v360
    %398 = vmatprep.subr.bf16.mxu0 %v363
    %399 = vmatpush1.bf16.msra.mxu0 %v362
    %400 = vmatprep.subr.bf16.mxu0 %v365
    %401 = vmatpush1.bf16.msra.mxu0 %v364
    %402 = vmatprep.subr.bf16.mxu0 %v367
    %403 = vmatpush1.bf16.msra.mxu0 %v366
    %404 = vmatprep.subr.bf16.mxu0 %v369
    %405 = vmatpush1.bf16.msra.mxu0 %v368
    %406 = vmatprep.subr.bf16.mxu0 %v371
    %407 = vmatpush1.bf16.msra.mxu0 %v370
    %408 = vmatprep.subr.bf16.mxu0 %v373
    %409 = vmatpush1.bf16.msra.mxu0 %v372
    %410 = vmatprep.subr.bf16.mxu0 %v375
    %411 = vmatpush1.bf16.msra.mxu0 %v374
    %412 = vmatprep.subr.bf16.mxu0 0
    %413 = vmatpush1.bf16.msra.mxu0 0
    %414 = vmatprep.subr.bf16.mxu0 0
    %415 = vmatpush1.bf16.msra.mxu0 0
    %416 = vmatprep.subr.bf16.mxu0 0
    %417 = vmatpush1.bf16.msra.mxu0 0
    %418 = vmatprep.subr.bf16.mxu0 0
    %419 = vmatpush1.bf16.msra.mxu0 0
    %420 = vmatprep.subr.bf16.mxu0 0
    %421 = vmatpush1.bf16.msra.mxu0 0
    %422 = vmatprep.subr.bf16.mxu0 0
    %423 = vmatpush1.bf16.msra.mxu0 0
    %424 = vmatprep.subr.bf16.mxu0 0
    %425 = vmatpush1.bf16.msra.mxu0 0
    %426 = vmatprep.mubr.bf16.mxu0 %v197
    %427 = vmatmul.mubr.bf16.gmra.mrb[0].mxu0 %v76
    %v428 = vpop.f32.mrb[0].mxu0
    %v429 = vadd.f32 0.0, %v428
    %v430 = vpop.f32.mrb[0].mxu0
    %v431 = vadd.f32 0.0, %v430
    %v432 = vpop.f32.mrb[0].mxu0
    %v433 = vadd.f32 0.0, %v432
    %v434 = vpop.f32.mrb[0].mxu0
    %v435 = vadd.f32 0.0, %v434
    %436 = vmatprep.mubr.bf16.mxu0 %v200
    %437 = vmatmul.mubr.bf16.gmra.mrb[0].mxu0 %v78
    %v438 = vpop.f32.mrb[0].mxu0
    %v439 = vadd.f32 0.0, %v438
    %v440 = vpop.f32.mrb[0].mxu0
    %v441 = vadd.f32 0.0, %v440
    %v442 = vpop.f32.mrb[0].mxu0
    %v443 = vadd.f32 0.0, %v442
    %v444 = vpop.f32.mrb[0].mxu0
    %v445 = vadd.f32 0.0, %v444
    %446 = vmatprep.mubr.bf16.mxu0 %v203
    %447 = vmatmul.mubr.bf16.gmra.mrb[0].mxu0 %v80
    %v448 = vpop.f32.mrb[0].mxu0
    %v449 = vadd.f32 0.0, %v448
    %v450 = vpop.f32.mrb[0].mxu0
    %v451 = vadd.f32 0.0, %v450
    %v452 = vpop.f32.mrb[0].mxu0
    %v453 = vpop.f32.mrb[0].mxu0
    %454 = vdwg.mxu0
    %v455 = vrot.slane %v240, 7
    %v456 = vrot.slane %v242, 7
    %v457 = vrot.slane %v244, 7
    %v458 = vrot.slane %v246, 7
    %v459 = vrot.slane %v250, 7
    %v460 = vrot.slane %v252, 7
    %v461 = vrot.slane %v254, 7
    %v462 = vrot.slane %v256, 7
    %v463 = vrot.slane %v260, 7
    %v464 = vrot.slane %v262, 7
    %v465 = vlaneseq
    %v466 = vshrl.u32 %v465, 7
    %vm467 = vcmp.lt.s32.totalorder %v466, 1
    %v468 = vsel %vm467, %v461, %v463
    %v469 = vsel %vm467, %v462, %v464
    %v470 = vsel %vm467, %v459, %v461
    %v471 = vsel %vm467, %v460, %v462
    %v472 = vsel %vm467, %v457, %v459
    %v473 = vsel %vm467, %v458, %v460
    %v474 = vsel %vm467, %v455, %v457
    %v475 = vsel %vm467, %v456, %v458
    %v476 = vsel %vm467, %v463, %v455
    %v477 = vsel %vm467, %v464, %v456
    %v478 = vrot.slane %v429, 1
    %v479 = vrot.slane %v431, 1
    %v480 = vrot.slane %v433, 1
    %v481 = vrot.slane %v435, 1
    %v482 = vrot.slane %v439, 1
    %v483 = vrot.slane %v441, 1
    %v484 = vrot.slane %v443, 1
    %v485 = vrot.slane %v445, 1
    %v486 = vrot.slane %v449, 1
    %v487 = vrot.slane %v451, 1
    %vm488 = vcmp.lt.s32.totalorder %v466, 7
    %v489 = vsel %vm488, %v484, %v486
    %v490 = vsel %vm488, %v485, %v487
    %v491 = vsel %vm488, %v482, %v484
    %v492 = vsel %vm488, %v483, %v485
    %v493 = vsel %vm488, %v480, %v482
    %v494 = vsel %vm488, %v481, %v483
    %v495 = vsel %vm488, %v478, %v480
    %v496 = vsel %vm488, %v479, %v481
    %v497 = vsel %vm488, %v486, %v478
    %v498 = vsel %vm488, %v487, %v479
    %v517 = vunpack.c.l.b16 %v267
    %v518 = vunpack.c.h.b16 %v267
    %v519 = vunpack.c.l.b16 %v268
    %v520 = vunpack.c.h.b16 %v268
    %v521 = vunpack.c.l.b16 %v269
    %v522 = vunpack.c.h.b16 %v269
    %v523 = vunpack.c.l.b16 %v270
    %v524 = vunpack.c.h.b16 %v270
    %v525 = vunpack.c.l.b16 %v271
    %v526 = vunpack.c.h.b16 %v271
    %v527 = vunpack.c.l.b16 %v272
    %v528 = vunpack.c.h.b16 %v272
    %v529 = vunpack.c.l.b16 %v273
    %v530 = vunpack.c.h.b16 %v273
    %v531 = vunpack.c.l.b16 %v274
    %v532 = vunpack.c.h.b16 %v274
    %v533 = vunpack.c.l.b16 %v275
    %v534 = vunpack.c.h.b16 %v275
    %v535 = vunpack.c.l.b16 %v276
    %v536 = vunpack.c.h.b16 %v276
    %v537 = vunpack.c.l.b16 %v277
    %v538 = vunpack.c.h.b16 %v277
    %v539 = vunpack.c.l.b16 %v278
    %v540 = vunpack.c.h.b16 %v278
    %v541 = vunpack.c.l.b16 %v279
    %v542 = vunpack.c.h.b16 %v279
    %v543 = vunpack.c.l.b16 %v280
    %v544 = vunpack.c.h.b16 %v280
    %v545 = vunpack.c.l.b16 %v281
    %v546 = vunpack.c.h.b16 %v281
    %v547 = vunpack.c.l.b16 %v282
    %v548 = vunpack.c.h.b16 %v282
    %v549 = vunpack.c.l.b16 %v283
    %v550 = vunpack.c.h.b16 %v283
    %v551 = vunpack.c.l.b16 %v284
    %v552 = vunpack.c.h.b16 %v284
    %v553 = vpack.c.b16 %v519, %v517
    %v554 = vpack.c.b16 %v520, %v518
    %v555 = vpack.c.b16 %v523, %v521
    %v556 = vpack.c.b16 %v524, %v522
    %v557 = vpack.c.b16 %v527, %v525
    %v558 = vpack.c.b16 %v528, %v526
    %v559 = vpack.c.b16 %v531, %v529
    %v560 = vpack.c.b16 %v532, %v530
    %v561 = vpack.c.b16 %v535, %v533
    %v562 = vpack.c.b16 %v536, %v534
    %v563 = vpack.c.b16 %v539, %v537
    %v564 = vpack.c.b16 %v540, %v538
    %v565 = vpack.c.b16 %v543, %v541
    %v566 = vpack.c.b16 %v544, %v542
    %v567 = vpack.c.b16 %v547, %v545
    %v568 = vpack.c.b16 %v548, %v546
    %v569 = vpack.c.b16 %v551, %v549
    %v570 = vpack.c.b16 %v552, %v550
    %589 = vmatprep.subr.bf16.mxu0 %v554
    %590 = vmatpush1.bf16.msra.mxu0 %v553
    %591 = vmatprep.subr.bf16.mxu0 %v556
    %592 = vmatpush1.bf16.msra.mxu0 %v555
    %593 = vmatprep.subr.bf16.mxu0 %v558
    %594 = vmatpush1.bf16.msra.mxu0 %v557
    %595 = vmatprep.subr.bf16.mxu0 %v560
    %596 = vmatpush1.bf16.msra.mxu0 %v559
    %597 = vmatprep.subr.bf16.mxu0 %v562
    %598 = vmatpush1.bf16.msra.mxu0 %v561
    %599 = vmatprep.subr.bf16.mxu0 %v564
    %600 = vmatpush1.bf16.msra.mxu0 %v563
    %601 = vmatprep.subr.bf16.mxu0 %v566
    %602 = vmatpush1.bf16.msra.mxu0 %v565
    %603 = vmatprep.subr.bf16.mxu0 %v568
    %604 = vmatpush1.bf16.msra.mxu0 %v567
    %605 = vmatprep.subr.bf16.mxu0 %v570
    %606 = vmatpush1.bf16.msra.mxu0 %v569
    %607 = vmatprep.subr.bf16.mxu0 0
    %608 = vmatpush1.bf16.msra.mxu0 0
    %609 = vmatprep.subr.bf16.mxu0 0
    %610 = vmatpush1.bf16.msra.mxu0 0
    %611 = vmatprep.subr.bf16.mxu0 0
    %612 = vmatpush1.bf16.msra.mxu0 0
    %613 = vmatprep.subr.bf16.mxu0 0
    %614 = vmatpush1.bf16.msra.mxu0 0
    %615 = vmatprep.subr.bf16.mxu0 0
    %616 = vmatpush1.bf16.msra.mxu0 0
    %617 = vmatprep.subr.bf16.mxu0 0
    %618 = vmatpush1.bf16.msra.mxu0 0
    %619 = vmatprep.subr.bf16.mxu0 0
    %620 = vmatpush1.bf16.msra.mxu0 0
    %621 = vmatprep.mubr.bf16.mxu0 %v197
    %622 = vmatmul.mubr.bf16.gmra.mrb[0].mxu0 %v76
    %v623 = vpop.f32.mrb[0].mxu0
    %v624 = vadd.f32 %v476, %v623
    %v625 = vpop.f32.mrb[0].mxu0
    %v626 = vadd.f32 %v477, %v625
    %v627 = vpop.f32.mrb[0].mxu0
    %v628 = vadd.f32 %v474, %v627
    %v629 = vpop.f32.mrb[0].mxu0
    %v630 = vadd.f32 %v475, %v629
    %631 = vmatprep.mubr.bf16.mxu0 %v200
    %632 = vmatmul.mubr.bf16.gmra.mrb[0].mxu0 %v78
    %v633 = vpop.f32.mrb[0].mxu0
    %v634 = vadd.f32 %v472, %v633
    %v635 = vpop.f32.mrb[0].mxu0
    %v636 = vadd.f32 %v473, %v635
    %v637 = vpop.f32.mrb[0].mxu0
    %v638 = vadd.f32 %v470, %v637
    %v639 = vpop.f32.mrb[0].mxu0
    %v640 = vadd.f32 %v471, %v639
    %641 = vmatprep.mubr.bf16.mxu0 %v203
    %642 = vmatmul.mubr.bf16.gmra.mrb[0].mxu0 %v80
    %v643 = vpop.f32.mrb[0].mxu0
    %v644 = vadd.f32 %v468, %v643
    %v645 = vpop.f32.mrb[0].mxu0
    %v646 = vadd.f32 %v469, %v645
    %v647 = vpop.f32.mrb[0].mxu0
    %v648 = vpop.f32.mrb[0].mxu0
    %649 = vdwg.mxu0
    %v650 = vadd.f32 %v624, %v495
    %v651 = vadd.f32 %v626, %v496
    %v652 = vadd.f32 %v628, %v493
    %v653 = vadd.f32 %v630, %v494
    %v654 = vadd.f32 %v634, %v491
    %v655 = vadd.f32 %v636, %v492
    %v656 = vadd.f32 %v638, %v489
    %v657 = vadd.f32 %v640, %v490
    %v658 = vadd.f32 %v644, %v497
    %v659 = vadd.f32 %v646, %v498
    %v660 = vld [vmem:[%s2] sm:$0x3]
    %v662 = vlaneseq
    %v663 = vshrl.u32 %v662, 7
    %v664 = vsub.s32 0, %v663
    %v665 = vrot.slane %v660, %v664
    %v666 = vlaneseq
    %v667 = vshrl.u32 %v666, 7
    %v668 = vsub.s32 1, %v667
    %v669 = vrot.slane %v660, %v668
    %v672 = vadd.f32 %v650, %v665
    %v673 = vadd.f32 %v651, %v669
    %v674 = vadd.f32 %v652, %v665
    %v675 = vadd.f32 %v653, %v669
    %v676 = vadd.f32 %v654, %v665
    %v677 = vadd.f32 %v655, %v669
    %v678 = vadd.f32 %v656, %v665
    %v679 = vadd.f32 %v657, %v669
    %v680 = vadd.f32 %v658, %v665
    %v681 = vadd.f32 %v659, %v669
    %v682 = vmax.f32 %v672, 0.0
    %v683 = vmax.f32 %v673, 0.0
    %v684 = vmax.f32 %v674, 0.0
    %v685 = vmax.f32 %v675, 0.0
    %v686 = vmax.f32 %v676, 0.0
    %v687 = vmax.f32 %v677, 0.0
    %v688 = vmax.f32 %v678, 0.0
    %v689 = vmax.f32 %v679, 0.0
    %v690 = vmax.f32 %v680, 0.0
    %v691 = vmax.f32 %v681, 0.0
    %693 = vset.pattern.permute.xlu0 0
    %694 = vperm.xlu0 %693, %v82
    %v695 = vpop.permute.xlu0 %694
    %698 = vset.pattern.permute.xlu0 0
    %699 = vperm.xlu0 %698, %v83
    %v700 = vpop.permute.xlu0 %699
    %703 = vset.pattern.permute.xlu0 0
    %704 = vperm.xlu0 %703, %v84
    %v705 = vpop.permute.xlu0 %704
    %708 = vset.pattern.permute.xlu0 0
    %709 = vperm.xlu0 %708, %v85
    %v710 = vpop.permute.xlu0 %709
    %713 = vset.pattern.permute.xlu0 0
    %714 = vperm.xlu0 %713, %v86
    %v715 = vpop.permute.xlu0 %714
    %v717 = vmul.f32 %v682, %v695
    %v718 = vmul.f32 %v683, %v695
    %v719 = vmul.f32 %v684, %v700
    %v720 = vmul.f32 %v685, %v700
    %v721 = vmul.f32 %v686, %v705
    %v722 = vmul.f32 %v687, %v705
    %v723 = vmul.f32 %v688, %v710
    %v724 = vmul.f32 %v689, %v710
    %v725 = vmul.f32 %v690, %v715
    %v726 = vmul.f32 %v691, %v715
    %v727 = vpack.c.bf16 %v719, %v717
    %v728 = vpack.c.bf16 %v720, %v718
    %v729 = vpack.c.bf16 %v723, %v721
    %v730 = vpack.c.bf16 %v724, %v722
    %v731 = vpack.c.bf16 %v725, %v725
    %v732 = vpack.c.bf16 %v726, %v726
    %v733 = vld [vmem:[#allocation7] sm:$0xff]
    %v734 = vld [vmem:[#allocation7 + $0x8] sm:$0xff]
    %v735 = vld [vmem:[#allocation7 + $0x10] sm:$0xff]
    %v736 = vld [vmem:[#allocation7 + $0x18] sm:$0xff]
    %v737 = vld [vmem:[#allocation7 + $0x20] sm:$0xff]
    %v738 = vld [vmem:[#allocation7 + $0x28] sm:$0xff]
    %v739 = vld [vmem:[#allocation7 + $0x30] sm:$0xff]
    %v740 = vld [vmem:[#allocation7 + $0x38] sm:$0xff]
    %v741 = vld [vmem:[#allocation7 + $0x40] sm:$0xff]
    %v742 = vld [vmem:[#allocation7 + $0x48] sm:$0xff]
    %v743 = vld [vmem:[#allocation7 + $0x50] sm:$0xff]
    %v744 = vld [vmem:[#allocation7 + $0x58] sm:$0xff]
    %v745 = vld [vmem:[#allocation7 + $0x60] sm:$0xff]
    %v746 = vld [vmem:[#allocation7 + $0x68] sm:$0xff]
    %v747 = vld [vmem:[#allocation7 + $0x70] sm:$0xff]
    %v748 = vld [vmem:[#allocation7 + $0x78] sm:$0xff]
    %v749 = vld [vmem:[#allocation7 + $0x80] sm:$0xff]
    %v750 = vld [vmem:[#allocation7 + $0x88] sm:$0xff]
    %v769 = vunpack.c.l.b16 %v733
    %v770 = vunpack.c.h.b16 %v733
    %v771 = vunpack.c.l.b16 %v734
    %v772 = vunpack.c.h.b16 %v734
    %v773 = vunpack.c.l.b16 %v735
    %v774 = vunpack.c.h.b16 %v735
    %v775 = vunpack.c.l.b16 %v736
    %v776 = vunpack.c.h.b16 %v736
    %v777 = vunpack.c.l.b16 %v737
    %v778 = vunpack.c.h.b16 %v737
    %v779 = vunpack.c.l.b16 %v738
    %v780 = vunpack.c.h.b16 %v738
    %v781 = vunpack.c.l.b16 %v739
    %v782 = vunpack.c.h.b16 %v739
    %v783 = vunpack.c.l.b16 %v740
    %v784 = vunpack.c.h.b16 %v740
    %v785 = vunpack.c.l.b16 %v741
    %v786 = vunpack.c.h.b16 %v741
    %v787 = vunpack.c.l.b16 %v742
    %v788 = vunpack.c.h.b16 %v742
    %v789 = vunpack.c.l.b16 %v743
    %v790 = vunpack.c.h.b16 %v743
    %v791 = vunpack.c.l.b16 %v744
    %v792 = vunpack.c.h.b16 %v744
    %v793 = vunpack.c.l.b16 %v745
    %v794 = vunpack.c.h.b16 %v745
    %v795 = vunpack.c.l.b16 %v746
    %v796 = vunpack.c.h.b16 %v746
    %v797 = vunpack.c.l.b16 %v747
    %v798 = vunpack.c.h.b16 %v747
    %v799 = vunpack.c.l.b16 %v748
    %v800 = vunpack.c.h.b16 %v748
    %v801 = vunpack.c.l.b16 %v749
    %v802 = vunpack.c.h.b16 %v749
    %v803 = vunpack.c.l.b16 %v750
    %v804 = vunpack.c.h.b16 %v750
    %v805 = vpack.c.b16 %v771, %v769
    %v806 = vpack.c.b16 %v772, %v770
    %v807 = vpack.c.b16 %v775, %v773
    %v808 = vpack.c.b16 %v776, %v774
    %v809 = vpack.c.b16 %v779, %v777
    %v810 = vpack.c.b16 %v780, %v778
    %v811 = vpack.c.b16 %v783, %v781
    %v812 = vpack.c.b16 %v784, %v782
    %v813 = vpack.c.b16 %v787, %v785
    %v814 = vpack.c.b16 %v788, %v786
    %v815 = vpack.c.b16 %v791, %v789
    %v816 = vpack.c.b16 %v792, %v790
    %v817 = vpack.c.b16 %v795, %v793
    %v818 = vpack.c.b16 %v796, %v794
    %v819 = vpack.c.b16 %v799, %v797
    %v820 = vpack.c.b16 %v800, %v798
    %v821 = vpack.c.b16 %v803, %v801
    %v822 = vpack.c.b16 %v804, %v802
    %v842 = vsel %vm195, %v728, 0
    %v845 = vsel %vm195, %v730, 0
    %v848 = vsel %vm195, %v732, 0
    %850 = vmatprep.subr.bf16.mxu0 %v806
    %851 = vmatpush1.bf16.msra.mxu0 %v805
    %852 = vmatprep.subr.bf16.mxu0 %v808
    %853 = vmatpush1.bf16.msra.mxu0 %v807
    %854 = vmatprep.subr.bf16.mxu0 %v810
    %855 = vmatpush1.bf16.msra.mxu0 %v809
    %856 = vmatprep.subr.bf16.mxu0 %v812
    %857 = vmatpush1.bf16.msra.mxu0 %v811
    %858 = vmatprep.subr.bf16.mxu0 %v814
    %859 = vmatpush1.bf16.msra.mxu0 %v813
    %860 = vmatprep.subr.bf16.mxu0 %v816
    %861 = vmatpush1.bf16.msra.mxu0 %v815
    %862 = vmatprep.subr.bf16.mxu0 %v818
    %863 = vmatpush1.bf16.msra.mxu0 %v817
    %864 = vmatprep.subr.bf16.mxu0 %v820
    %865 = vmatpush1.bf16.msra.mxu0 %v819
    %866 = vmatprep.subr.bf16.mxu0 %v822
    %867 = vmatpush1.bf16.msra.mxu0 %v821
    %868 = vmatprep.subr.bf16.mxu0 0
    %869 = vmatpush1.bf16.msra.mxu0 0
    %870 = vmatprep.subr.bf16.mxu0 0
    %871 = vmatpush1.bf16.msra.mxu0 0
    %872 = vmatprep.subr.bf16.mxu0 0
    %873 = vmatpush1.bf16.msra.mxu0 0
    %874 = vmatprep.subr.bf16.mxu0 0
    %875 = vmatpush1.bf16.msra.mxu0 0
    %876 = vmatprep.subr.bf16.mxu0 0
    %877 = vmatpush1.bf16.msra.mxu0 0
    %878 = vmatprep.subr.bf16.mxu0 0
    %879 = vmatpush1.bf16.msra.mxu0 0
    %880 = vmatprep.subr.bf16.mxu0 0
    %881 = vmatpush1.bf16.msra.mxu0 0
    %882 = vmatprep.mubr.bf16.mxu0 %v842
    %883 = vmatmul.mubr.bf16.gmra.mrb[0].mxu0 %v727
    %v884 = vpop.f32.mrb[0].mxu0
    %v885 = vadd.f32 0.0, %v884
    %v886 = vpop.f32.mrb[0].mxu0
    %v887 = vadd.f32 0.0, %v886
    %v888 = vpop.f32.mrb[0].mxu0
    %v889 = vadd.f32 0.0, %v888
    %v890 = vpop.f32.mrb[0].mxu0
    %v891 = vadd.f32 0.0, %v890
    %892 = vmatprep.mubr.bf16.mxu0 %v845
    %893 = vmatmul.mubr.bf16.gmra.mrb[0].mxu0 %v729
    %v894 = vpop.f32.mrb[0].mxu0
    %v895 = vadd.f32 0.0, %v894
    %v896 = vpop.f32.mrb[0].mxu0
    %v897 = vadd.f32 0.0, %v896
    %v898 = vpop.f32.mrb[0].mxu0
    %v899 = vadd.f32 0.0, %v898
    %v900 = vpop.f32.mrb[0].mxu0
    %v901 = vadd.f32 0.0, %v900
    %902 = vmatprep.mubr.bf16.mxu0 %v848
    %903 = vmatmul.mubr.bf16.gmra.mrb[0].mxu0 %v731
    %v904 = vpop.f32.mrb[0].mxu0
    %v905 = vadd.f32 0.0, %v904
    %v906 = vpop.f32.mrb[0].mxu0
    %v907 = vadd.f32 0.0, %v906
    %v908 = vpop.f32.mrb[0].mxu0
    %v909 = vpop.f32.mrb[0].mxu0
    %910 = vdwg.mxu0
    %s911 = scalar_lea.vmem [#allocation7], 144
    %v912 = vld [vmem:[%s911] sm:$0xff]
    %v913 = vld [vmem:[%s911 + $0x8] sm:$0xff]
    %v914 = vld [vmem:[%s911 + $0x10] sm:$0xff]
    %v915 = vld [vmem:[%s911 + $0x18] sm:$0xff]
    %v916 = vld [vmem:[%s911 + $0x20] sm:$0xff]
    %v917 = vld [vmem:[%s911 + $0x28] sm:$0xff]
    %v918 = vld [vmem:[%s911 + $0x30] sm:$0xff]
    %v919 = vld [vmem:[%s911 + $0x38] sm:$0xff]
    %v920 = vld [vmem:[%s911 + $0x40] sm:$0xff]
    %v921 = vld [vmem:[%s911 + $0x48] sm:$0xff]
    %v922 = vld [vmem:[%s911 + $0x50] sm:$0xff]
    %v923 = vld [vmem:[%s911 + $0x58] sm:$0xff]
    %v924 = vld [vmem:[%s911 + $0x60] sm:$0xff]
    %v925 = vld [vmem:[%s911 + $0x68] sm:$0xff]
    %v926 = vld [vmem:[%s911 + $0x70] sm:$0xff]
    %v927 = vld [vmem:[%s911 + $0x78] sm:$0xff]
    %v928 = vld [vmem:[%s911 + $0x80] sm:$0xff]
    %v929 = vld [vmem:[%s911 + $0x88] sm:$0xff]
    %s930 = scalar_lea.vmem [#allocation7], 288
    %v931 = vld [vmem:[%s930] sm:$0xff]
    %v932 = vld [vmem:[%s930 + $0x8] sm:$0xff]
    %v933 = vld [vmem:[%s930 + $0x10] sm:$0xff]
    %v934 = vld [vmem:[%s930 + $0x18] sm:$0xff]
    %v935 = vld [vmem:[%s930 + $0x20] sm:$0xff]
    %v936 = vld [vmem:[%s930 + $0x28] sm:$0xff]
    %v937 = vld [vmem:[%s930 + $0x30] sm:$0xff]
    %v938 = vld [vmem:[%s930 + $0x38] sm:$0xff]
    %v939 = vld [vmem:[%s930 + $0x40] sm:$0xff]
    %v940 = vld [vmem:[%s930 + $0x48] sm:$0xff]
    %v941 = vld [vmem:[%s930 + $0x50] sm:$0xff]
    %v942 = vld [vmem:[%s930 + $0x58] sm:$0xff]
    %v943 = vld [vmem:[%s930 + $0x60] sm:$0xff]
    %v944 = vld [vmem:[%s930 + $0x68] sm:$0xff]
    %v945 = vld [vmem:[%s930 + $0x70] sm:$0xff]
    %v946 = vld [vmem:[%s930 + $0x78] sm:$0xff]
    %v947 = vld [vmem:[%s930 + $0x80] sm:$0xff]
    %v948 = vld [vmem:[%s930 + $0x88] sm:$0xff]
    %v967 = vunpack.c.l.b16 %v931
    %v968 = vunpack.c.h.b16 %v931
    %v969 = vunpack.c.l.b16 %v932
    %v970 = vunpack.c.h.b16 %v932
    %v971 = vunpack.c.l.b16 %v933
    %v972 = vunpack.c.h.b16 %v933
    %v973 = vunpack.c.l.b16 %v934
    %v974 = vunpack.c.h.b16 %v934
    %v975 = vunpack.c.l.b16 %v935
    %v976 = vunpack.c.h.b16 %v935
    %v977 = vunpack.c.l.b16 %v936
    %v978 = vunpack.c.h.b16 %v936
    %v979 = vunpack.c.l.b16 %v937
    %v980 = vunpack.c.h.b16 %v937
    %v981 = vunpack.c.l.b16 %v938
    %v982 = vunpack.c.h.b16 %v938
    %v983 = vunpack.c.l.b16 %v939
    %v984 = vunpack.c.h.b16 %v939
    %v985 = vunpack.c.l.b16 %v940
    %v986 = vunpack.c.h.b16 %v940
    %v987 = vunpack.c.l.b16 %v941
    %v988 = vunpack.c.h.b16 %v941
    %v989 = vunpack.c.l.b16 %v942
    %v990 = vunpack.c.h.b16 %v942
    %v991 = vunpack.c.l.b16 %v943
    %v992 = vunpack.c.h.b16 %v943
    %v993 = vunpack.c.l.b16 %v944
    %v994 = vunpack.c.h.b16 %v944
    %v995 = vunpack.c.l.b16 %v945
    %v996 = vunpack.c.h.b16 %v945
    %v997 = vunpack.c.l.b16 %v946
    %v998 = vunpack.c.h.b16 %v946
    %v999 = vunpack.c.l.b16 %v947
    %v1000 = vunpack.c.h.b16 %v947
    %v1001 = vunpack.c.l.b16 %v948
    %v1002 = vunpack.c.h.b16 %v948
    %v1003 = vpack.c.b16 %v969, %v967
    %v1004 = vpack.c.b16 %v970, %v968
    %v1005 = vpack.c.b16 %v973, %v971
    %v1006 = vpack.c.b16 %v974, %v972
    %v1007 = vpack.c.b16 %v977, %v975
    %v1008 = vpack.c.b16 %v978, %v976
    %v1009 = vpack.c.b16 %v981, %v979
    %v1010 = vpack.c.b16 %v982, %v980
    %v1011 = vpack.c.b16 %v985, %v983
    %v1012 = vpack.c.b16 %v986, %v984
    %v1013 = vpack.c.b16 %v989, %v987
    %v1014 = vpack.c.b16 %v990, %v988
    %v1015 = vpack.c.b16 %v993, %v991
    %v1016 = vpack.c.b16 %v994, %v992
    %v1017 = vpack.c.b16 %v997, %v995
    %v1018 = vpack.c.b16 %v998, %v996
    %v1019 = vpack.c.b16 %v1001, %v999
    %v1020 = vpack.c.b16 %v1002, %v1000
    %1039 = vmatprep.subr.bf16.mxu0 %v1004
    %1040 = vmatpush1.bf16.msra.mxu0 %v1003
    %1041 = vmatprep.subr.bf16.mxu0 %v1006
    %1042 = vmatpush1.bf16.msra.mxu0 %v1005
    %1043 = vmatprep.subr.bf16.mxu0 %v1008
    %1044 = vmatpush1.bf16.msra.mxu0 %v1007
    %1045 = vmatprep.subr.bf16.mxu0 %v1010
    %1046 = vmatpush1.bf16.msra.mxu0 %v1009
    %1047 = vmatprep.subr.bf16.mxu0 %v1012
    %1048 = vmatpush1.bf16.msra.mxu0 %v1011
    %1049 = vmatprep.subr.bf16.mxu0 %v1014
    %1050 = vmatpush1.bf16.msra.mxu0 %v1013
    %1051 = vmatprep.subr.bf16.mxu0 %v1016
    %1052 = vmatpush1.bf16.msra.mxu0 %v1015
    %1053 = vmatprep.subr.bf16.mxu0 %v1018
    %1054 = vmatpush1.bf16.msra.mxu0 %v1017
    %1055 = vmatprep.subr.bf16.mxu0 %v1020
    %1056 = vmatpush1.bf16.msra.mxu0 %v1019
    %1057 = vmatprep.subr.bf16.mxu0 0
    %1058 = vmatpush1.bf16.msra.mxu0 0
    %1059 = vmatprep.subr.bf16.mxu0 0
    %1060 = vmatpush1.bf16.msra.mxu0 0
    %1061 = vmatprep.subr.bf16.mxu0 0
    %1062 = vmatpush1.bf16.msra.mxu0 0
    %1063 = vmatprep.subr.bf16.mxu0 0
    %1064 = vmatpush1.bf16.msra.mxu0 0
    %1065 = vmatprep.subr.bf16.mxu0 0
    %1066 = vmatpush1.bf16.msra.mxu0 0
    %1067 = vmatprep.subr.bf16.mxu0 0
    %1068 = vmatpush1.bf16.msra.mxu0 0
    %1069 = vmatprep.subr.bf16.mxu0 0
    %1070 = vmatpush1.bf16.msra.mxu0 0
    %1071 = vmatprep.mubr.bf16.mxu0 %v842
    %1072 = vmatmul.mubr.bf16.gmra.mrb[0].mxu0 %v727
    %v1073 = vpop.f32.mrb[0].mxu0
    %v1074 = vadd.f32 0.0, %v1073
    %v1075 = vpop.f32.mrb[0].mxu0
    %v1076 = vadd.f32 0.0, %v1075
    %v1077 = vpop.f32.mrb[0].mxu0
    %v1078 = vadd.f32 0.0, %v1077
    %v1079 = vpop.f32.mrb[0].mxu0
    %v1080 = vadd.f32 0.0, %v1079
    %1081 = vmatprep.mubr.bf16.mxu0 %v845
    %1082 = vmatmul.mubr.bf16.gmra.mrb[0].mxu0 %v729
    %v1083 = vpop.f32.mrb[0].mxu0
    %v1084 = vadd.f32 0.0, %v1083
    %v1085 = vpop.f32.mrb[0].mxu0
    %v1086 = vadd.f32 0.0, %v1085
    %v1087 = vpop.f32.mrb[0].mxu0
    %v1088 = vadd.f32 0.0, %v1087
    %v1089 = vpop.f32.mrb[0].mxu0
    %v1090 = vadd.f32 0.0, %v1089
    %1091 = vmatprep.mubr.bf16.mxu0 %v848
    %1092 = vmatmul.mubr.bf16.gmra.mrb[0].mxu0 %v731
    %v1093 = vpop.f32.mrb[0].mxu0
    %v1094 = vadd.f32 0.0, %v1093
    %v1095 = vpop.f32.mrb[0].mxu0
    %v1096 = vadd.f32 0.0, %v1095
    %v1097 = vpop.f32.mrb[0].mxu0
    %v1098 = vpop.f32.mrb[0].mxu0
    %1099 = vdwg.mxu0
    %v1100 = vrot.slane %v885, 7
    %v1101 = vrot.slane %v887, 7
    %v1102 = vrot.slane %v889, 7
    %v1103 = vrot.slane %v891, 7
    %v1104 = vrot.slane %v895, 7
    %v1105 = vrot.slane %v897, 7
    %v1106 = vrot.slane %v899, 7
    %v1107 = vrot.slane %v901, 7
    %v1108 = vrot.slane %v905, 7
    %v1109 = vrot.slane %v907, 7
    %v1110 = vsel %vm467, %v1106, %v1108
    %v1111 = vsel %vm467, %v1107, %v1109
    %v1112 = vsel %vm467, %v1104, %v1106
    %v1113 = vsel %vm467, %v1105, %v1107
    %v1114 = vsel %vm467, %v1102, %v1104
    %v1115 = vsel %vm467, %v1103, %v1105
    %v1116 = vsel %vm467, %v1100, %v1102
    %v1117 = vsel %vm467, %v1101, %v1103
    %v1118 = vsel %vm467, %v1108, %v1100
    %v1119 = vsel %vm467, %v1109, %v1101
    %v1120 = vrot.slane %v1074, 1
    %v1121 = vrot.slane %v1076, 1
    %v1122 = vrot.slane %v1078, 1
    %v1123 = vrot.slane %v1080, 1
    %v1124 = vrot.slane %v1084, 1
    %v1125 = vrot.slane %v1086, 1
    %v1126 = vrot.slane %v1088, 1
    %v1127 = vrot.slane %v1090, 1
    %v1128 = vrot.slane %v1094, 1
    %v1129 = vrot.slane %v1096, 1
    %v1130 = vsel %vm488, %v1126, %v1128
    %v1131 = vsel %vm488, %v1127, %v1129
    %v1132 = vsel %vm488, %v1124, %v1126
    %v1133 = vsel %vm488, %v1125, %v1127
    %v1134 = vsel %vm488, %v1122, %v1124
    %v1135 = vsel %vm488, %v1123, %v1125
    %v1136 = vsel %vm488, %v1120, %v1122
    %v1137 = vsel %vm488, %v1121, %v1123
    %v1138 = vsel %vm488, %v1128, %v1120
    %v1139 = vsel %vm488, %v1129, %v1121
    %v1158 = vunpack.c.l.b16 %v912
    %v1159 = vunpack.c.h.b16 %v912
    %v1160 = vunpack.c.l.b16 %v913
    %v1161 = vunpack.c.h.b16 %v913
    %v1162 = vunpack.c.l.b16 %v914
    %v1163 = vunpack.c.h.b16 %v914
    %v1164 = vunpack.c.l.b16 %v915
    %v1165 = vunpack.c.h.b16 %v915
    %v1166 = vunpack.c.l.b16 %v916
    %v1167 = vunpack.c.h.b16 %v916
    %v1168 = vunpack.c.l.b16 %v917
    %v1169 = vunpack.c.h.b16 %v917
    %v1170 = vunpack.c.l.b16 %v918
    %v1171 = vunpack.c.h.b16 %v918
    %v1172 = vunpack.c.l.b16 %v919
    %v1173 = vunpack.c.h.b16 %v919
    %v1174 = vunpack.c.l.b16 %v920
    %v1175 = vunpack.c.h.b16 %v920
    %v1176 = vunpack.c.l.b16 %v921
    %v1177 = vunpack.c.h.b16 %v921
    %v1178 = vunpack.c.l.b16 %v922
    %v1179 = vunpack.c.h.b16 %v922
    %v1180 = vunpack.c.l.b16 %v923
    %v1181 = vunpack.c.h.b16 %v923
    %v1182 = vunpack.c.l.b16 %v924
    %v1183 = vunpack.c.h.b16 %v924
    %v1184 = vunpack.c.l.b16 %v925
    %v1185 = vunpack.c.h.b16 %v925
    %v1186 = vunpack.c.l.b16 %v926
    %v1187 = vunpack.c.h.b16 %v926
    %v1188 = vunpack.c.l.b16 %v927
    %v1189 = vunpack.c.h.b16 %v927
    %v1190 = vunpack.c.l.b16 %v928
    %v1191 = vunpack.c.h.b16 %v928
    %v1192 = vunpack.c.l.b16 %v929
    %v1193 = vunpack.c.h.b16 %v929
    %v1194 = vpack.c.b16 %v1160, %v1158
    %v1195 = vpack.c.b16 %v1161, %v1159
    %v1196 = vpack.c.b16 %v1164, %v1162
    %v1197 = vpack.c.b16 %v1165, %v1163
    %v1198 = vpack.c.b16 %v1168, %v1166
    %v1199 = vpack.c.b16 %v1169, %v1167
    %v1200 = vpack.c.b16 %v1172, %v1170
    %v1201 = vpack.c.b16 %v1173, %v1171
    %v1202 = vpack.c.b16 %v1176, %v1174
    %v1203 = vpack.c.b16 %v1177, %v1175
    %v1204 = vpack.c.b16 %v1180, %v1178
    %v1205 = vpack.c.b16 %v1181, %v1179
    %v1206 = vpack.c.b16 %v1184, %v1182
    %v1207 = vpack.c.b16 %v1185, %v1183
    %v1208 = vpack.c.b16 %v1188, %v1186
    %v1209 = vpack.c.b16 %v1189, %v1187
    %v1210 = vpack.c.b16 %v1192, %v1190
    %v1211 = vpack.c.b16 %v1193, %v1191
    %1230 = vmatprep.subr.bf16.mxu0 %v1195
    %1231 = vmatpush1.bf16.msra.mxu0 %v1194
    %1232 = vmatprep.subr.bf16.mxu0 %v1197
    %1233 = vmatpush1.bf16.msra.mxu0 %v1196
    %1234 = vmatprep.subr.bf16.mxu0 %v1199
    %1235 = vmatpush1.bf16.msra.mxu0 %v1198
    %1236 = vmatprep.subr.bf16.mxu0 %v1201
    %1237 = vmatpush1.bf16.msra.mxu0 %v1200
    %1238 = vmatprep.subr.bf16.mxu0 %v1203
    %1239 = vmatpush1.bf16.msra.mxu0 %v1202
    %1240 = vmatprep.subr.bf16.mxu0 %v1205
    %1241 = vmatpush1.bf16.msra.mxu0 %v1204
    %1242 = vmatprep.subr.bf16.mxu0 %v1207
    %1243 = vmatpush1.bf16.msra.mxu0 %v1206
    %1244 = vmatprep.subr.bf16.mxu0 %v1209
    %1245 = vmatpush1.bf16.msra.mxu0 %v1208
    %1246 = vmatprep.subr.bf16.mxu0 %v1211
    %1247 = vmatpush1.bf16.msra.mxu0 %v1210
    %1248 = vmatprep.subr.bf16.mxu0 0
    %1249 = vmatpush1.bf16.msra.mxu0 0
    %1250 = vmatprep.subr.bf16.mxu0 0
    %1251 = vmatpush1.bf16.msra.mxu0 0
    %1252 = vmatprep.subr.bf16.mxu0 0
    %1253 = vmatpush1.bf16.msra.mxu0 0
    %1254 = vmatprep.subr.bf16.mxu0 0
    %1255 = vmatpush1.bf16.msra.mxu0 0
    %1256 = vmatprep.subr.bf16.mxu0 0
    %1257 = vmatpush1.bf16.msra.mxu0 0
    %1258 = vmatprep.subr.bf16.mxu0 0
    %1259 = vmatpush1.bf16.msra.mxu0 0
    %1260 = vmatprep.subr.bf16.mxu0 0
    %1261 = vmatpush1.bf16.msra.mxu0 0
    %1262 = vmatprep.mubr.bf16.mxu0 %v842
    %1263 = vmatmul.mubr.bf16.gmra.mrb[0].mxu0 %v727
    %v1264 = vpop.f32.mrb[0].mxu0
    %v1265 = vadd.f32 %v1118, %v1264
    %v1266 = vpop.f32.mrb[0].mxu0
    %v1267 = vadd.f32 %v1119, %v1266
    %v1268 = vpop.f32.mrb[0].mxu0
    %v1269 = vadd.f32 %v1116, %v1268
    %v1270 = vpop.f32.mrb[0].mxu0
    %v1271 = vadd.f32 %v1117, %v1270
    %1272 = vmatprep.mubr.bf16.mxu0 %v845
    %1273 = vmatmul.mubr.bf16.gmra.mrb[0].mxu0 %v729
    %v1274 = vpop.f32.mrb[0].mxu0
    %v1275 = vadd.f32 %v1114, %v1274
    %v1276 = vpop.f32.mrb[0].mxu0
    %v1277 = vadd.f32 %v1115, %v1276
    %v1278 = vpop.f32.mrb[0].mxu0
    %v1279 = vadd.f32 %v1112, %v1278
    %v1280 = vpop.f32.mrb[0].mxu0
    %v1281 = vadd.f32 %v1113, %v1280
    %1282 = vmatprep.mubr.bf16.mxu0 %v848
    %1283 = vmatmul.mubr.bf16.gmra.mrb[0].mxu0 %v731
    %v1284 = vpop.f32.mrb[0].mxu0
    %v1285 = vadd.f32 %v1110, %v1284
    %v1286 = vpop.f32.mrb[0].mxu0
    %v1287 = vadd.f32 %v1111, %v1286
    %v1288 = vpop.f32.mrb[0].mxu0
    %v1289 = vpop.f32.mrb[0].mxu0
    %1290 = vdwg.mxu0
    %v1291 = vadd.f32 %v1265, %v1136
    %v1292 = vadd.f32 %v1267, %v1137
    %v1293 = vadd.f32 %v1269, %v1134
    %v1294 = vadd.f32 %v1271, %v1135
    %v1295 = vadd.f32 %v1275, %v1132
    %v1296 = vadd.f32 %v1277, %v1133
    %v1297 = vadd.f32 %v1279, %v1130
    %v1298 = vadd.f32 %v1281, %v1131
    %v1299 = vadd.f32 %v1285, %v1138
    %v1300 = vadd.f32 %v1287, %v1139
    %v1301 = vld [vmem:[%s4] sm:$0x3]
    %v1303 = vlaneseq
    %v1304 = vshrl.u32 %v1303, 7
    %v1305 = vsub.s32 0, %v1304
    %v1306 = vrot.slane %v1301, %v1305
    %v1307 = vlaneseq
    %v1308 = vshrl.u32 %v1307, 7
    %v1309 = vsub.s32 1, %v1308
    %v1310 = vrot.slane %v1301, %v1309
    %v1313 = vadd.f32 %v1291, %v1306
    %v1314 = vadd.f32 %v1292, %v1310
    %v1315 = vadd.f32 %v1293, %v1306
    %v1316 = vadd.f32 %v1294, %v1310
    %v1317 = vadd.f32 %v1295, %v1306
    %v1318 = vadd.f32 %v1296, %v1310
    %v1319 = vadd.f32 %v1297, %v1306
    %v1320 = vadd.f32 %v1298, %v1310
    %v1321 = vadd.f32 %v1299, %v1306
    %v1322 = vadd.f32 %v1300, %v1310
    %v1323 = vadd.f32 %v1313, %v66
    %v1324 = vadd.f32 %v1314, %v67
    %v1325 = vadd.f32 %v1315, %v68
    %v1326 = vadd.f32 %v1316, %v69
    %v1327 = vadd.f32 %v1317, %v70
    %v1328 = vadd.f32 %v1318, %v71
    %v1329 = vadd.f32 %v1319, %v72
    %v1330 = vadd.f32 %v1320, %v73
    %v1331 = vadd.f32 %v1321, %v74
    %v1332 = vadd.f32 %v1322, %v75
    %v1333 = vmax.f32 %v1323, 0.0
    %v1334 = vmax.f32 %v1324, 0.0
    %v1335 = vmax.f32 %v1325, 0.0
    %v1336 = vmax.f32 %v1326, 0.0
    %v1337 = vmax.f32 %v1327, 0.0
    %v1338 = vmax.f32 %v1328, 0.0
    %v1339 = vmax.f32 %v1329, 0.0
    %v1340 = vmax.f32 %v1330, 0.0
    %v1341 = vmax.f32 %v1331, 0.0
    %v1342 = vmax.f32 %v1332, 0.0
    %1343 = vst [vmem:[#allocation8] sm:$0xff] %v1333
    %1344 = vst.msk [vmem:[#allocation8 + $0x8] sm:$0xff] %vm195, %v1334
    %1345 = vst [vmem:[#allocation8 + $0x10] sm:$0xff] %v1335
    %1346 = vst.msk [vmem:[#allocation8 + $0x18] sm:$0xff] %vm195, %v1336
    %1347 = vst [vmem:[#allocation8 + $0x20] sm:$0xff] %v1337
    %1348 = vst.msk [vmem:[#allocation8 + $0x28] sm:$0xff] %vm195, %v1338
    %1349 = vst [vmem:[#allocation8 + $0x30] sm:$0xff] %v1339
    %1350 = vst.msk [vmem:[#allocation8 + $0x38] sm:$0xff] %vm195, %v1340
    %1351 = vst [vmem:[#allocation8 + $0x40] sm:$0xff] %v1341
    %1352 = vst.msk [vmem:[#allocation8 + $0x48] sm:$0xff] %vm195, %v1342
    // Predicated region
    $region38: #{tpu_custom_call.1} parent=1 // pred_check
      _
    $region39: #{tpu_custom_call.1} parent=1 // pred_check_branch
      %1354 = sbr.rel (0) target = $region41
    $region40: #{tpu_custom_call.1} parent=1 // pred_region
      %s1356 = ssub.s32 1280, 1280
      %1357 = vsyncadd [#allocation4], %s1356
      %s1358 = sshll.u32 [#allocation8], 4
      %s1359 = int_to_ptr.vmem [resolvable:$true] %s1358
      %1364 = dma.vmem_to_hbm [thread:$0]  %s1359, 1280, %s6, [#allocation4], 256, 256, 16
    $region41: #{tpu_custom_call.1} parent=1 // pred_fallthru
      _
    // Predicated region
    $region42: #{tpu_custom_call.1} parent=1 // pred_check
      _
    $region43: #{tpu_custom_call.1} parent=1 // pred_check_branch
      %1366 = sbr.rel (0) target = $region45
    $region44: #{tpu_custom_call.1} parent=1 // pred_region
      %1367 = dma.done [#allocation4], 1280
    $region45: #{tpu_custom_call.1} parent=1 // pred_fallthru
      _
    %1368 = vsyncpa [#allocation3], 1
    %1369 = vsyncpa [#allocation6], 1
    %1370 = vsyncpa [#allocation4], 1

</llo_original>
